<compile_context>
chip_gen: v7x
topology: tpu7x:2x2x1
jax: 0.10.0
libtpu: 0.0.40
codegen_flags: <defaults>
</compile_context>

<pallas_src>
import functools

import jax
import jax.numpy as jnp
from jax import lax
from jax.experimental import pallas as pl
from jax.experimental.pallas import tpu as pltpu

VMEM = pltpu.MemorySpace.VMEM
SMEM = pltpu.MemorySpace.SMEM


# --------------------------------------------------------------------------
# Batched S^T S for all layers in one call (grid over the layer axis)
# --------------------------------------------------------------------------
def _sts_batched_kernel(s_ref, o_ref):
    s = s_ref[0, :, :]
    # Contract dim 0 of both operands: S^T S without an explicit transpose.
    o_ref[0, :, :] = lax.dot_general(
        s, s, dimension_numbers=(((0,), (0,)), ((), ())),
        preferred_element_type=jnp.float32)


def sts_batched(S_all):
    layers, H, _ = S_all.shape
    return pl.pallas_call(
        _sts_batched_kernel,
        out_shape=jax.ShapeDtypeStruct((layers, H, H), jnp.float32),
        grid=(layers,),
        in_specs=[pl.BlockSpec((1, H, H), lambda i: (i, 0, 0))],
        out_specs=pl.BlockSpec((1, H, H), lambda i: (i, 0, 0)),
        compiler_params=pltpu.CompilerParams(
            dimension_semantics=("parallel",)),
    )(S_all)


# --------------------------------------------------------------------------
# vec = rho*(L - P) + where(mask, x, 0)  on a lane-dense flattened (1, N) view
# --------------------------------------------------------------------------
def _vec_kernel(scal_ref, l_ref, p_ref, x_ref, m_ref, o_ref):
    rho = scal_ref[0]
    o_ref[...] = rho * (l_ref[...] - p_ref[...]) + jnp.where(
        m_ref[...] != 0, x_ref[...], 0.0)


def make_vec(rho, L, P, x, mask_f):
    H, U = L.shape
    N = H * U
    scal = jnp.reshape(rho.astype(jnp.float32), (1,))
    flat = lambda a: a.reshape(1, N)          # row-major == torch .view(H*U)
    out = pl.pallas_call(
        _vec_kernel,
        out_shape=jax.ShapeDtypeStruct((1, N), jnp.float32),
        in_specs=[pl.BlockSpec(memory_space=SMEM)]
        + [pl.BlockSpec(memory_space=VMEM)] * 4,
        out_specs=pl.BlockSpec(memory_space=VMEM),
    )(scal, flat(L), flat(P), flat(x), flat(mask_f))
    return out.reshape(N)


# --------------------------------------------------------------------------
# On-the-fly assembly of A = diag(q) + lamda1*kron(DDt, I_H)
#                          + lamda2*kron(I_U, S^T S) + rho*I
# One lane-dense row strip of SH rows (all N columns) per grid step, built from
# the small factors only.  Selector matrices (one-hot, from iotas) feed tiny
# MXU matmuls so no per-element gathers are needed.
# --------------------------------------------------------------------------
def _assemble_kernel(H, scal_ref, ddt_ref, sts_ref, q_ref, a_ref):
    lamda1 = scal_ref[0]
    lamda2 = scal_ref[1]
    rho = scal_ref[2]
    SH, N = a_ref.shape
    U = ddt_ref.shape[0]
    base = pl.program_id(0) * SH                       # global row offset

    r_loc = lax.broadcasted_iota(jnp.int32, (SH, N), 0)
    c = lax.broadcasted_iota(jnp.int32, (SH, N), 1)
    r_glob = r_loc + base
    h_r = r_glob % H
    u_r = r_glob // H
    h_c = c % H
    u_c = c // H

    eye_h = h_r == h_c                                  # support of kron(DDt, I_H)
    blk_eq = u_r == u_c                                 # support of kron(I_U, StS)
    diag = jnp.logical_and(eye_h, blk_eq)               # global diagonal r == c

    # One-hot selectors (f32) built from iotas.
    rr_u = lax.broadcasted_iota(jnp.int32, (SH, U), 0)
    jj_u = lax.broadcasted_iota(jnp.int32, (SH, U), 1)
    R_u = (((rr_u + base) // H) == jj_u).astype(jnp.float32)       # (SH, U)

    jj_c = lax.broadcasted_iota(jnp.int32, (U, N), 0)
    cc_c = lax.broadcasted_iota(jnp.int32, (U, N), 1)
    C_u = ((cc_c // H) == jj_c).astype(jnp.float32)                # (U, N)

    rr_h = lax.broadcasted_iota(jnp.int32, (SH, H), 0)
    jj_h = lax.broadcasted_iota(jnp.int32, (SH, H), 1)
    R_h = (((rr_h + base) % H) == jj_h).astype(jnp.float32)        # (SH, H)

    jj_hc = lax.broadcasted_iota(jnp.int32, (H, N), 0)
    cc_hc = lax.broadcasted_iota(jnp.int32, (H, N), 1)
    C_h = ((cc_hc % H) == jj_hc).astype(jnp.float32)               # (H, N)

    # DDt[u_r, u_c] and StS[h_r, h_c] broadcast to the strip via small matmuls.
    d_bc = jnp.dot(jnp.dot(R_u, ddt_ref[...], preferred_element_type=jnp.float32),
                   C_u, preferred_element_type=jnp.float32)
    s_bc = jnp.dot(jnp.dot(R_h, sts_ref[...], preferred_element_type=jnp.float32),
                   C_h, preferred_element_type=jnp.float32)
    q_bc = jnp.broadcast_to(q_ref[...], (SH, N))

    a_ref[...] = (lamda1 * jnp.where(eye_h, d_bc, 0.0)
                  + lamda2 * jnp.where(blk_eq, s_bc, 0.0)
                  + jnp.where(diag, q_bc + rho, 0.0))


def assemble_A(lamda1, lamda2, rho, DDt, StS, q_row, H):
    U = DDt.shape[0]
    N = H * U
    # One H-row block-strip per step when it tiles to (8,128); otherwise fall
    # back to a single full-matrix block (full extents are always legal).
    if H % 8 == 0:
        SH, steps = H, U
    else:
        SH, steps = N, 1
    scal = jnp.stack([lamda1, lamda2, rho]).astype(jnp.float32)
    kern = functools.partial(_assemble_kernel, H)
    return pl.pallas_call(
        kern,
        out_shape=jax.ShapeDtypeStruct((N, N), jnp.float32),
        grid=(steps,),
        in_specs=[
            pl.BlockSpec(memory_space=SMEM),                 # [lamda1, lamda2, rho]
            pl.BlockSpec((U, U), lambda i: (0, 0)),          # D D^T   (small factor)
            pl.BlockSpec((H, H), lambda i: (0, 0)),          # S^T S   (small factor)
            pl.BlockSpec((1, N), lambda i: (0, 0)),          # q row (diag entries)
        ],
        out_specs=pl.BlockSpec((SH, N), lambda i: (i, 0)),
        compiler_params=pltpu.CompilerParams(
            dimension_semantics=("parallel",)),
    )(scal, DDt, StS, q_row)


# --------------------------------------------------------------------------
# Fused SVT reconstruction + P update:
#   L  = (U * relu(s - tau*s[0])) @ V^T
#   P' = P + neta * (X - L)
# --------------------------------------------------------------------------
def _svt_p_kernel(scal_ref, u_ref, s_ref, vt_ref, x_ref, p_ref, l_ref, pout_ref):
    tau = scal_ref[0]
    neta = scal_ref[1]
    s = s_ref[...]                           # (1, k), descending singular values
    s_shrunk = jnp.maximum(s - tau * s[:, 0:1], 0.0)
    L = jnp.dot(u_ref[...] * s_shrunk, vt_ref[...],
                preferred_element_type=jnp.float32)
    l_ref[...] = L
    pout_ref[...] = p_ref[...] + neta * (x_ref[...] - L)


def svt_p_update(tau, neta, Um, s_row, Vt, X, P):
    H = Um.shape[0]
    U = Vt.shape[1]
    scal = jnp.stack([tau, neta]).astype(jnp.float32)
    return pl.pallas_call(
        _svt_p_kernel,
        out_shape=(jax.ShapeDtypeStruct((H, U), jnp.float32),
                   jax.ShapeDtypeStruct((H, U), jnp.float32)),
        in_specs=[pl.BlockSpec(memory_space=SMEM)]
        + [pl.BlockSpec(memory_space=VMEM)] * 5,
        out_specs=[pl.BlockSpec(memory_space=VMEM),
                   pl.BlockSpec(memory_space=VMEM)],
    )(scal, Um, s_row, Vt, X, P)


# --------------------------------------------------------------------------
# Deterministic parameter initialization (mirrors UnfoldedNet3dC_admm.__init__)
# --------------------------------------------------------------------------
def init_params(layers, size1, size2,
                initial_rho=0.5, initial_neta=0.1, initial_v=0.1,
                initial_lamda1=0.01, initial_lamda2=0.01,
                initial_S=0.1, initial_P=0.0, coef_gamma=0.5):
    return dict(
        layers=layers, size1=size1, size2=size2,
        rho=jnp.ones((layers,), jnp.float32) * initial_rho,
        neta=jnp.ones((layers,), jnp.float32) * initial_neta,
        v=jnp.ones((layers,), jnp.float32) * initial_v,
        lamda1=jnp.ones((layers,), jnp.float32) * initial_lamda1,
        lamda2=jnp.ones((layers,), jnp.float32) * initial_lamda2,
        S=jnp.ones((layers, size1, size1), jnp.float32) * initial_S,
        coef_gamma=jnp.float32(coef_gamma),
        initial_P=jnp.float32(initial_P),
    )


# --------------------------------------------------------------------------
# Forward pass of UnfoldedNet3dC_admm (x0 is the (H, U) measurement matrix)
# --------------------------------------------------------------------------
def unfolded_net_admm_forward(x0, params):
    H, U = x0.shape
    N = H * U
    x0 = x0.astype(jnp.float32)
    entries_mask = x0 != 0
    mask_f = entries_mask.astype(jnp.float32)

    # D: (U, U-1) first-difference matrix; DDt = D D^T is the small Kronecker factor.
    D = jnp.zeros((U, U - 1), jnp.float32)
    D = D.at[jnp.arange(U - 1), jnp.arange(U - 1)].set(-1.0)
    D = D.at[jnp.arange(1, U), jnp.arange(U - 1)].set(1.0)
    DDt = D @ D.T
    # Dtilda is part of the module's returned state; built once (setup glue),
    # never streamed through the per-layer kernels.
    Dtilda = jnp.kron(DDt, jnp.eye(H, dtype=jnp.float32))

    P = jnp.ones((params['size1'], params['size2']), jnp.float32) * params['initial_P']
    L = jnp.zeros((H, U), jnp.float32)
    q_row = mask_f.reshape(1, N)     # Q.view(H*U), row-major h*U+u, diag entries

    # All layers' S^T S in one batched Pallas call (no per-layer launches).
    StS_all = sts_batched(params['S'])

    for i in range(params['layers']):
        neta_i = params['neta'][i]
        v_i = params['v'][i]
        lamda1_i = params['lamda1'][i] ** (i + 1)
        lamda2_i = params['lamda2'][i] ** (i + 1)
        rho_i = params['rho'][i] ** (i + 1)
        tau_i = jax.nn.sigmoid(v_i) * params['coef_gamma']

        vec = make_vec(rho_i, L, P, x0, mask_f)                       # Pallas
        A = assemble_A(lamda1_i, lamda2_i, rho_i, DDt, StS_all[i],    # Pallas
                       q_row, H)
        # TODO(synk): dense SPD factorization/solve has no Pallas equivalent; the
        # solve replaces the reference's inv(A) @ vec (same math, ~1/3 the FLOPs).
        Xcol = jnp.linalg.solve(A, vec)
        X = Xcol.reshape(H, U)

        M = X + P
        # TODO(synk): SVD has no Pallas equivalent; factorize in XLA, reconstruct in Pallas.
        Um, s, Vt = jnp.linalg.svd(M, full_matrices=False)
        L, P = svt_p_update(tau_i, neta_i, Um, s.reshape(1, -1), Vt, X, P)  # Pallas (fused)

    data = jnp.stack([x0, L])        # data[0] = input, data[1] = final L
    return data, entries_mask, Dtilda, P


if __name__ == "__main__":
    H, U, layers = 16, 16, 3
    key = jax.random.PRNGKey(0)
    k1, k2 = jax.random.split(key)
    x = jax.random.normal(k1, (H, U), dtype=jnp.float32)
    keep = jax.random.bernoulli(k2, p=0.5, shape=(H, U))
    x = jnp.where(keep, x, 0.0)      # missing entries are exact zeros (mask = x != 0)

    params = init_params(layers, H, U)
    data, mask, Dtilda, P_final = unfolded_net_admm_forward(x, params)
    jax.block_until_ready((data, mask, Dtilda, P_final))
    assert data.shape == (2, H, U)
    assert Dtilda.shape == (H * U, H * U)
    assert P_final.shape == (H, U)
    print("KERNEL_OK")
</pallas_src>

<mosaic_0001>
module attributes {stable_mosaic.version = 11 : i64} {
  func.func @_sts_batched_kernel(%arg0: i32, %arg1: memref<1x16x16xf32, #tpu.memory_space<vmem>>, %arg2: memref<1x16x16xf32, #tpu.memory_space<vmem>>) attributes {dimension_semantics = [#tpu.dimension_semantics<parallel>], iteration_bounds = array<i64: 3>, scalar_prefetch = 0 : i64, scratch_operands = 0 : i64, tpu.core_type = #tpu.core_type<tc>, window_params = [{transform_indices = @transform_0, window_bounds = array<i64: 1, 16, 16>}, {transform_indices = @transform_1, window_bounds = array<i64: 1, 16, 16>}]} {
    %c0 = arith.constant 0 : index
    %c0_0 = arith.constant 0 : index
    %c0_1 = arith.constant 0 : index
    %0 = vector.load %arg1[%c0, %c0_0, %c0_1] : memref<1x16x16xf32, #tpu.memory_space<vmem>>, vector<1x16x16xf32>
    %1 = vector.shape_cast %0 : vector<1x16x16xf32> to vector<16x16xf32>
    %cst = arith.constant dense<0.000000e+00> : vector<16x16xf32>
    %2 = tpu.matmul %1, %1, %cst {dimension_numbers = #tpu.dot_dimension_numbers<[0], [0], [1], [1], [0, 1, 1, 1], [], []>} : vector<16x16xf32>, vector<16x16xf32>, vector<16x16xf32> -> vector<16x16xf32>
    %c0_2 = arith.constant 0 : index
    %c0_3 = arith.constant 0 : index
    %c0_4 = arith.constant 0 : index
    %3 = vector.load %arg2[%c0_2, %c0_3, %c0_4] : memref<1x16x16xf32, #tpu.memory_space<vmem>>, vector<1x16x16xf32>
    %4 = vector.shape_cast %3 : vector<1x16x16xf32> to vector<16x16xf32>
    %5 = vector.shape_cast %2 : vector<16x16xf32> to vector<1x16x16xf32>
    tpu.vector_store %arg2[%c0_2, %c0_3, %c0_4], %5 {strides = array<i32>} : memref<1x16x16xf32, #tpu.memory_space<vmem>>, vector<1x16x16xf32>,
    return
  }
  func.func @transform_0(%arg0: i32) -> (i32, i32, i32) {
    %c0_i32 = arith.constant 0 : i32
    %c0_i32_0 = arith.constant 0 : i32
    %c0_i32_1 = arith.constant 0 : i32
    return %arg0, %c0_i32, %c0_i32_0 : i32, i32, i32
  }
  func.func @transform_1(%arg0: i32) -> (i32, i32, i32) {
    %c0_i32 = arith.constant 0 : i32
    %c0_i32_0 = arith.constant 0 : i32
    %c0_i32_1 = arith.constant 0 : i32
    return %arg0, %c0_i32, %c0_i32_0 : i32, i32, i32
  }
}

</mosaic_0001>

<llo_original>
// kernel: tpu_custom_call.1
$region0: #{tpu_custom_call.1}
  #allocation0 [shape = 'u32[]', space=smem, size = 0x4, offset = 0x4, fixed_abs, tag = 'smem constant byte address 0x4 - core index']
  #allocation1 [shape = 'u32[144,128]{1,0:T(1,128)}', space=vmem, size = 0x12000, scoped, tag = 'internal scratch']
  %s0 = inlined_call_operand.hbm [shape: f32[3,16,16], index: 0, kind: input, shape index: {}]
  %s1 = inlined_call_operand.hbm [shape: f32[3,16,16], index: 1, kind: output, shape index: {}]
  %s2 = sld [smem:[#allocation0]]
  $region41: #{tpu_custom_call.1} parent=0
    _
  %s4 = ssub.s32 1, %s2
  %s5 = scalar_select 0, %s4, %s2
  $region1: #{tpu_custom_call.1} parent=0
    #allocation2 [shape = 'u8[16384]{0}', space=vmem, size = 0x4000, scoped, tag = 'input window, operand 0']
    #allocation3 [shape = 's32[2]{0}', space=sflag, size = 0x8, scoped, tag = 'scoped memory for tpu_custom_call.1']
    #allocation4 [shape = 's32[2]{0}', space=sflag, size = 0x8, scoped, tag = 'scoped memory for tpu_custom_call.1']
    #allocation5 [shape = 'u8[16384]{0}', space=vmem, size = 0x4000, scoped, tag = 'output window, operand 0']
    %6 = vsyncpa [#allocation3], 0
    %s7 = scalar_lea.sflag [#allocation3], 1
    %8 = vsyncpa %s7, 0
    %9 = vsyncpa [#allocation4], 0
    %s10 = scalar_lea.sflag [#allocation4], 1
    %11 = vsyncpa %s10, 0
    loop: start=0, step=1, limit=5
    $region2: #{tpu_custom_call.1} parent=1 // loop_pre_header
      _
    $region3: #{tpu_custom_call.1} parent=1 // loop_header
      %s13 = sphi 0, %s17
      %p14 = scmp.ge.s32.totalorder %s13, 5
      %s23 = sphi 0, %s25
      %s26 = sphi 0, %s23
      %s27 = sphi 0, %s26
      %s43 = sphi 0, %s27
      %s49 = sphi 0, %s51
      %s52 = sphi 0, %s49
      %s53 = sphi 0, %s52
      %s69 = sphi 0, %s53
    $region4: #{tpu_custom_call.1} parent=1 // loop_header_branch
      %16 = sbr.rel (%p14) target = $region8
    $region5: #{tpu_custom_call.1} parent=1 // loop_body
      %s18 = ssub.s32 %s13, 1
      %s19 = ssub.s32 %s13, 2
      %s20 = sadd.s32 %s13, 1
      %s21 = ssub.s32 %s13, %s20
      %p22 = scmp.eq.s32.totalorder %s21, 0
      %s24 = sadd.s32 %s23, 1
      %s25 = scalar_select %p22, %s23, %s24
      %p28 = pneg %p22
      %p29 = scmp.eq.s32.totalorder %s13, 2
      %p30 = por %p28, %p29
      %p31 = scmp.ne.s32.totalorder %s23, %s26
      %p32 = scmp.eq.s32.totalorder %s13, 0
      %p33 = por %p31, %p32
      %p34 = scmp.ne.s32.totalorder %s23, %s26
      %p35 = scmp.eq.s32.totalorder %s18, 2
      %p36 = por %p34, %p35
      %p37 = scmp.ne.s32.totalorder %s26, %s27
      %p38 = scmp.eq.s32.totalorder %s18, 0
      %p39 = por %p37, %p38
      %p40 = scmp.ne.s32.totalorder %s26, %s27
      %p41 = scmp.eq.s32.totalorder %s19, 2
      %p42 = por %p40, %p41
      %p44 = scmp.ne.s32.totalorder %s27, %s43
      %p45 = scmp.eq.s32.totalorder %s19, 0
      %p46 = por %p44, %p45
      %s47 = ssub.s32 %s13, %s20
      %p48 = scmp.eq.s32.totalorder %s47, 0
      %s50 = sadd.s32 %s49, 1
      %s51 = scalar_select %p48, %s49, %s50
      %p54 = pneg %p48
      %p55 = scmp.eq.s32.totalorder %s13, 2
      %p56 = por %p54, %p55
      %p57 = scmp.ne.s32.totalorder %s49, %s52
      %p58 = scmp.eq.s32.totalorder %s13, 0
      %p59 = por %p57, %p58
      %p60 = scmp.ne.s32.totalorder %s49, %s52
      %p61 = scmp.eq.s32.totalorder %s18, 2
      %p62 = por %p60, %p61
      %p63 = scmp.ne.s32.totalorder %s52, %s53
      %p64 = scmp.eq.s32.totalorder %s18, 0
      %p65 = por %p63, %p64
      %p66 = scmp.ne.s32.totalorder %s52, %s53
      %p67 = scmp.eq.s32.totalorder %s19, 2
      %p68 = por %p66, %p67
      %p70 = scmp.ne.s32.totalorder %s53, %s69
      %p71 = scmp.eq.s32.totalorder %s19, 0
      %p72 = por %p70, %p71
      %p73 = scmp.le.s32.totalorder 1, %s13
      %p74 = scmp.lt.s32.totalorder %s13, 4
      %p75 = pnand %p73, %p74
      %p76 = pneg %p75
      // Predicated region
      $region9: #{tpu_custom_call.1} parent=5 // pred_check
        _
      $region10: #{tpu_custom_call.1} parent=5 // pred_check_branch
        %78 = sbr.rel (%p75) target = $region12
      $region11: #{tpu_custom_call.1} parent=5 // pred_region
        %s79 = ssub.s32 %s13, 1
      $region12: #{tpu_custom_call.1} parent=5 // pred_fallthru
        _
      %p80 = scmp.lt.s32.totalorder %s13, 3
      // Predicated region
      $region13: #{tpu_custom_call.1} parent=5 // pred_check
        %p81 = pneg %p80
      $region14: #{tpu_custom_call.1} parent=5 // pred_check_branch
        %83 = sbr.rel (%p81) target = $region16
      $region15: #{tpu_custom_call.1} parent=5 // pred_region
        // Predicated region
        $region17: #{tpu_custom_call.1} parent=15 // pred_check
          %p84 = pneg %p33
        $region18: #{tpu_custom_call.1} parent=15 // pred_check_branch
          %86 = sbr.rel (%p84) target = $region20
        $region19: #{tpu_custom_call.1} parent=15 // pred_region
          %s87 = sand.u32 %s23, 1
          %s88 = scalar_lea.sflag [#allocation3], %s87
          %s89 = sand.u32 %s23, 1
          %s90 = smul.addr %s89, 16
          %s91 = scalar_lea.vmem [#allocation2], %s90
          %s93 = ssub.s32 256, 256
          %94 = vsyncadd %s88, %s93
          %s95 = smul.addr %s13, 2
          %s96 = smul.addr %s95, 128
          %s97 = scalar_lea.hbm %s0, %s96
          %s98 = sshll.u32 %s91, 4
          %s99 = int_to_ptr.vmem [resolvable:$true] %s98
          %104 = dma.hbm_to_vmem [thread:$0]  %s97, 256, %s99, %s88, 128, 128, 8
        $region20: #{tpu_custom_call.1} parent=15 // pred_fallthru
          _
      $region16: #{tpu_custom_call.1} parent=5 // pred_fallthru
        _
      %p105 = scmp.le.s32.totalorder 1, %s13
      %p106 = scmp.lt.s32.totalorder %s13, 4
      %p107 = pnand %p105, %p106
      %p108 = pneg %p107
      // Predicated region
      $region21: #{tpu_custom_call.1} parent=5 // pred_check
        _
      $region22: #{tpu_custom_call.1} parent=5 // pred_check_branch
        %110 = sbr.rel (%p107) target = $region24
      $region23: #{tpu_custom_call.1} parent=5 // pred_region
        %s111 = ssub.s32 %s13, 1
        %s112 = sand.u32 %s26, 1
        %s113 = scalar_lea.sflag [#allocation3], %s112
        %s114 = sand.u32 %s26, 1
        %s115 = smul.addr %s114, 16
        %s116 = scalar_lea.vmem [#allocation2], %s115
        // Predicated region
        $region25: #{tpu_custom_call.1} parent=23 // pred_check
          %p117 = pneg %p39
        $region26: #{tpu_custom_call.1} parent=23 // pred_check_branch
          %119 = sbr.rel (%p117) target = $region28
        $region27: #{tpu_custom_call.1} parent=23 // pred_region
          %120 = dma.done %s113, 256
        $region28: #{tpu_custom_call.1} parent=23 // pred_fallthru
          _
        %s121 = sand.u32 %s26, 1
        %s122 = scalar_lea.sflag [#allocation3], %s121
        %s123 = sand.u32 %s26, 1
        %s124 = smul.addr %s123, 16
        %s125 = scalar_lea.vmem [#allocation2], %s124
        %p126 = pneg %p39
        %p127 = pneg %p36
        %p128 = pneg %p65
        %p129 = pneg %p62
        %s130 = sand.u32 %s52, 1
        %s131 = scalar_lea.sflag [#allocation4], %s130
        %s132 = sand.u32 %s52, 1
        %s133 = smul.addr %s132, 16
        %s134 = scalar_lea.vmem [#allocation5], %s133
        %v135 = vld [vmem:[%s116] sm:$0xff]
        %v136 = vld [vmem:[%s116 + $0x8] sm:$0xff]
        %137 = vxpose.xlu0.b32.start [1/16] %v135, 128
        %138 = vxpose.xlu0.b32.cont [2/16] %v136, 128
        %139 = vxpose.xlu0.b32.cont [3/16] 0.0, 128
        %140 = vxpose.xlu0.b32.cont [4/16] 0.0, 128
        %141 = vxpose.xlu0.b32.cont [5/16] 0.0, 128
        %142 = vxpose.xlu0.b32.cont [6/16] 0.0, 128
        %143 = vxpose.xlu0.b32.cont [7/16] 0.0, 128
        %144 = vxpose.xlu0.b32.cont [8/16] 0.0, 128
        %145 = vxpose.xlu0.b32.cont [9/16] 0.0, 128
        %146 = vxpose.xlu0.b32.cont [10/16] 0.0, 128
        %147 = vxpose.xlu0.b32.cont [11/16] 0.0, 128
        %148 = vxpose.xlu0.b32.cont [12/16] 0.0, 128
        %149 = vxpose.xlu0.b32.cont [13/16] 0.0, 128
        %150 = vxpose.xlu0.b32.cont [14/16] 0.0, 128
        %151 = vxpose.xlu0.b32.cont [15/16] 0.0, 128
        %152 = vxpose.xlu0.b32.end [16/16] 0.0, 128
        %v153 = vpop.trf.xlu0
        %v154 = vpop.trf.xlu0
        %v155 = vpop.trf.xlu0
        %v156 = vpop.trf.xlu0
        %v157 = vpop.trf.xlu0
        %v158 = vpop.trf.xlu0
        %v159 = vpop.trf.xlu0
        %v160 = vpop.trf.xlu0
        %v161 = vpop.trf.xlu0
        %v162 = vpop.trf.xlu0
        %v163 = vpop.trf.xlu0
        %v164 = vpop.trf.xlu0
        %v165 = vpop.trf.xlu0
        %v166 = vpop.trf.xlu0
        %v167 = vpop.trf.xlu0
        %v168 = vpop.trf.xlu0
        %vm169 = vcmask 130048
        %v171 = vsel %vm169, %v153, 0
        %v174 = vsel %vm169, %v154, 0
        %176 = vmatprep.subr.mxu0 0.0
        %177 = vmatpush1.msra.mxu0 %v135
        %178 = vmatprep.subr.mxu0 0.0
        %179 = vmatpush1.msra.mxu0 %v136
        %180 = vmatprep.subr.mxu0 0.0
        %181 = vmatpush1.msra.mxu0 0.0
        %182 = vmatprep.subr.mxu0 0.0
        %183 = vmatpush1.msra.mxu0 0.0
        %184 = vmatprep.subr.mxu0 0.0
        %185 = vmatpush1.msra.mxu0 0.0
        %186 = vmatprep.subr.mxu0 0.0
        %187 = vmatpush1.msra.mxu0 0.0
        %188 = vmatprep.subr.mxu0 0.0
        %189 = vmatpush1.msra.mxu0 0.0
        %190 = vmatprep.subr.mxu0 0.0
        %191 = vmatpush1.msra.mxu0 0.0
        %192 = vmatprep.subr.mxu0 0.0
        %193 = vmatpush1.msra.mxu0 0.0
        %194 = vmatprep.subr.mxu0 0.0
        %195 = vmatpush1.msra.mxu0 0.0
        %196 = vmatprep.subr.mxu0 0.0
        %197 = vmatpush1.msra.mxu0 0.0
        %198 = vmatprep.subr.mxu0 0.0
        %199 = vmatpush1.msra.mxu0 0.0
        %200 = vmatprep.subr.mxu0 0.0
        %201 = vmatpush1.msra.mxu0 0.0
        %202 = vmatprep.subr.mxu0 0.0
        %203 = vmatpush1.msra.mxu0 0.0
        %204 = vmatprep.subr.mxu0 0.0
        %205 = vmatpush1.msra.mxu0 0.0
        %206 = vmatprep.subr.mxu0 0.0
        %207 = vmatpush1.msra.mxu0 0.0
        %208 = vmatprep.subr.mxu0 0.0
        %209 = vmatpush1.msra.mxu0 0.0
        %210 = vmatprep.subr.mxu0 0.0
        %211 = vmatpush1.msra.mxu0 0.0
        %212 = vmatprep.subr.mxu0 0.0
        %213 = vmatpush1.msra.mxu0 0.0
        %214 = vmatprep.subr.mxu0 0.0
        %215 = vmatpush1.msra.mxu0 0.0
        %216 = vmatprep.subr.mxu0 0.0
        %217 = vmatpush1.msra.mxu0 0.0
        %218 = vmatprep.subr.mxu0 0.0
        %219 = vmatpush1.msra.mxu0 0.0
        %220 = vmatprep.subr.mxu0 0.0
        %221 = vmatpush1.msra.mxu0 0.0
        %222 = vmatprep.subr.mxu0 0.0
        %223 = vmatpush1.msra.mxu0 0.0
        %224 = vmatprep.subr.mxu0 0.0
        %225 = vmatpush1.msra.mxu0 0.0
        %226 = vmatprep.subr.mxu0 0.0
        %227 = vmatpush1.msra.mxu0 0.0
        %228 = vmatprep.subr.mxu0 0.0
        %229 = vmatpush1.msra.mxu0 0.0
        %230 = vmatprep.subr.mxu0 0.0
        %231 = vmatpush1.msra.mxu0 0.0
        %232 = vmatprep.subr.mxu0 0.0
        %233 = vmatpush1.msra.mxu0 0.0
        %234 = vmatprep.subr.mxu0 0.0
        %235 = vmatpush1.msra.mxu0 0.0
        %236 = vmatprep.subr.mxu0 0.0
        %237 = vmatpush1.msra.mxu0 0.0
        %238 = vmatprep.subr.mxu0 0.0
        %239 = vmatpush1.msra.mxu0 0.0
        %240 = vmatprep.mubr.f32.mxu0 0.0
        %241 = vmatmul.mubr.f32.gmra.mrb[0].mxu0 %v171
        %v242 = vpop.f32.mrb[0].mxu0
        %v243 = vadd.f32 0.0, %v242
        %v244 = vpop.f32.mrb[0].mxu0
        %245 = vmatprep.mubr.f32.mxu0 0.0
        %246 = vmatmul.mubr.f32.gmra.mrb[0].mxu0 %v174
        %v247 = vpop.f32.mrb[0].mxu0
        %v248 = vadd.f32 0.0, %v247
        %v249 = vpop.f32.mrb[0].mxu0
        %250 = vdwg.mxu0
        %251 = vst.msk [vmem:[%s134] sm:$0xff] %vm169, %v243
        %252 = vst.msk [vmem:[%s134 + $0x8] sm:$0xff] %vm169, %v248
        %s253 = sand.u32 %s52, 1
        %s254 = scalar_lea.sflag [#allocation4], %s253
        %s255 = sand.u32 %s52, 1
        %s256 = smul.addr %s255, 16
        %s257 = scalar_lea.vmem [#allocation5], %s256
        // Predicated region
        $region29: #{tpu_custom_call.1} parent=23 // pred_check
          %p258 = pneg %p62
        $region30: #{tpu_custom_call.1} parent=23 // pred_check_branch
          %260 = sbr.rel (%p258) target = $region32
        $region31: #{tpu_custom_call.1} parent=23 // pred_region
          %s262 = ssub.s32 256, 256
          %263 = vsyncadd %s254, %s262
          %s264 = smul.addr %s18, 2
          %s265 = smul.addr %s264, 128
          %s266 = scalar_lea.hbm %s1, %s265
          %s267 = sshll.u32 %s257, 4
          %s268 = int_to_ptr.vmem [resolvable:$true] %s267
          %273 = dma.vmem_to_hbm [thread:$0]  %s268, 256, %s266, %s254, 128, 128, 8
        $region32: #{tpu_custom_call.1} parent=23 // pred_fallthru
          _
      $region24: #{tpu_custom_call.1} parent=5 // pred_fallthru
        _
      %p274 = scmp.le.s32.totalorder 2, %s13
      // Predicated region
      $region33: #{tpu_custom_call.1} parent=5 // pred_check
        %p275 = pneg %p274
      $region34: #{tpu_custom_call.1} parent=5 // pred_check_branch
        %277 = sbr.rel (%p275) target = $region36
      $region35: #{tpu_custom_call.1} parent=5 // pred_region
        %s278 = ssub.s32 %s13, 2
        // Predicated region
        $region37: #{tpu_custom_call.1} parent=35 // pred_check
          %p279 = pneg %p68
        $region38: #{tpu_custom_call.1} parent=35 // pred_check_branch
          %281 = sbr.rel (%p279) target = $region40
        $region39: #{tpu_custom_call.1} parent=35 // pred_region
          %s282 = sand.u32 %s53, 1
          %s283 = scalar_lea.sflag [#allocation4], %s282
          %s284 = sand.u32 %s53, 1
          %s285 = smul.addr %s284, 16
          %s286 = scalar_lea.vmem [#allocation5], %s285
          %287 = dma.done %s283, 256
        $region40: #{tpu_custom_call.1} parent=35 // pred_fallthru
          _
      $region36: #{tpu_custom_call.1} parent=5 // pred_fallthru
        _
    $region6: #{tpu_custom_call.1} parent=1 // loop_footer
      %s17 = sadd.s32 1, %s13
    $region7: #{tpu_custom_call.1} parent=1 // loop_footer_branch
      %12 = sbr.rel target = $region3
    $region8: #{tpu_custom_call.1} parent=1 // loop_exit
      _
    %288 = vsyncpa [#allocation3], 1
    %s289 = scalar_lea.sflag [#allocation3], 1
    %290 = vsyncpa %s289, 1
    %291 = vsyncpa [#allocation4], 1
    %s292 = scalar_lea.sflag [#allocation4], 1
    %293 = vsyncpa %s292, 1

</llo_original>
